<compile_context>
chip_gen: v5e
topology: v5e:2x2
jax: 0.10.0
libtpu: 0.0.40
codegen_flags: <defaults>
</compile_context>

<pallas_src>
import functools

import jax
import jax.numpy as jnp
from jax.experimental import pallas as pl
from jax.experimental.pallas import tpu as pltpu

_LANE = 128


def _round_up(x, m):
    return (x + m - 1) // m * m


def transint_kernel(l1_flag, x_ref, out_ref):
    """Project pos/neg translation vectors onto null(A) and score.

    x_ref block is [4, D, TB] (rows: pos_sub, neg_sub, a1, a2), with the
    embedding dim on sublanes and batch on lanes, so all elementwise work and
    the score stores are lane-dense.
    """
    a1 = x_ref[2]                                      # [D, TB]
    a2 = x_ref[3]                                      # [D, TB]

    # Per-sample Gram matrix of the rank<=2 basis: [1, TB] scalars per sample.
    g11 = jnp.sum(a1 * a1, axis=0, keepdims=True)
    g12 = jnp.sum(a1 * a2, axis=0, keepdims=True)
    g22 = jnp.sum(a2 * a2, axis=0, keepdims=True)
    det = g11 * g22 - g12 * g12
    nz = det != 0.0

    # approx=False: the EUP approximation would exceed the score tolerance here.
    inv_det = pl.reciprocal(jnp.where(nz, det, 1.0), approx=False)
    # Reference fallback when det == 0: (A A^T)^{-1} := eye(2) / g11.
    # (g11 is additionally guarded so degenerate all-zero bases stay finite;
    #  real basis rows have g11 > 0.)
    inv_g11 = pl.reciprocal(jnp.where(g11 != 0.0, g11, 1.0), approx=False)

    i11 = jnp.where(nz, g22 * inv_det, inv_g11)
    i22 = jnp.where(nz, g11 * inv_det, inv_g11)
    i12 = jnp.where(nz, -g12 * inv_det, jnp.zeros_like(g12))

    def project_and_score(x):
        # y = (I - A^T (A A^T)^{-1} A) x   ==   x - c1*a1 - c2*a2
        d1 = jnp.sum(a1 * x, axis=0, keepdims=True)
        d2 = jnp.sum(a2 * x, axis=0, keepdims=True)
        c1 = i11 * d1 + i12 * d2
        c2 = i12 * d1 + i22 * d2
        y = x - c1 * a1 - c2 * a2
        if l1_flag:
            return jnp.sum(jnp.abs(y), axis=0, keepdims=True)     # [1, TB]
        return jnp.sum(y * y, axis=0, keepdims=True)              # [1, TB]

    # Direct row stores (no sublane concat).
    out_ref[0:1, :] = project_and_score(x_ref[0])
    out_ref[1:2, :] = project_and_score(x_ref[1])


def _vmem_capacity_bytes():
    try:
        return int(pltpu.get_tpu_info().vmem_capacity_bytes)
    except Exception:  # pragma: no cover - conservative fallback (v7x per-TC)
        return 64 << 20


def transint_forward(ent_emb, vvr_heads, rel2head, rel2mult, bases,
                     pos_h, pos_t, pos_r, neg_h, neg_t, neg_r, l1_flag=True):
    """Host-side glue (gathers, h+r-t sums, layout) + pallas_call.

    Returns (pos, neg), each shape [B] float32.
    """
    del neg_r  # unused by the reference forward (negatives reuse pos_r everywhere)
    B = pos_h.shape[0]
    D = ent_emb.shape[1]

    # ---------------- tile / grid selection ----------------
    vmem_cap = _vmem_capacity_bytes()
    # Double-buffered stacked-input budget: ~16 MiB on v5e/v6e, ~12.8 MiB on v7x.
    budget = min(16 << 20, vmem_cap // 5)
    bytes_per_col = 4 * D * 4                       # 4 operands, f32, per lane
    tb_cap = max(_LANE, (budget // (2 * bytes_per_col)) // _LANE * _LANE)

    B_pad = _round_up(B, _LANE)
    TB = min(tb_cap, 4096)
    if B_pad >= 2 * _LANE:
        # Keep at least 2 grid steps so the "parallel" axis can be sharded
        # across v7x's two TensorCores (no effect on v5e/v6e).
        TB = min(TB, max(_LANE, (B_pad // 2) // _LANE * _LANE))
    else:
        TB = B_pad
    B_pad = _round_up(B_pad, TB)
    grid = (B_pad // TB,)

    # ---------------- index padding (cheap, int32 only) ----------------
    pad = B_pad - B

    def _pad_idx(idx):
        return jnp.pad(idx, (0, pad)) if pad else idx

    h_idx = _pad_idx(pos_h)
    t_idx = _pad_idx(pos_t)
    r_idx = _pad_idx(pos_r)
    nh_idx = _pad_idx(neg_h)
    nt_idx = _pad_idx(neg_t)

    # ---------------- gathers from pre-transposed tables ----------------
    # One-time small transposes of the parameter tables; the per-sample gathers
    # then land directly in the kernel's [D, B] lane-dense layout.
    ent_T = ent_emb.T                                # [D, E]
    heads_T = vvr_heads.T                            # [D, H]
    bases_T = jnp.transpose(bases, (1, 2, 0))        # [2, D, R]

    # vvrel_embedding_func: bundle-head embedding scaled by the relation multiplier.
    r_emb_t = heads_T[:, rel2head[r_idx]] * rel2mult[r_idx][None, :]   # [D, B_pad]

    # Translation vectors (negative triple reuses pos_r's embedding — reference quirk).
    psub_t = ent_T[:, h_idx] + r_emb_t - ent_T[:, t_idx]               # [D, B_pad]
    nsub_t = ent_T[:, nh_idx] + r_emb_t - ent_T[:, nt_idx]             # [D, B_pad]

    # Rank-2 basis rows for pos_r (used for BOTH pos and neg projections).
    a1_t = bases_T[0][:, r_idx]                                        # [D, B_pad]
    a2_t = bases_T[1][:, r_idx]                                        # [D, B_pad]

    # Single stacked operand -> one DMA per grid step.
    stacked = jnp.stack([psub_t, nsub_t, a1_t, a2_t], axis=0)          # [4, D, B_pad]
    stacked = stacked.astype(jnp.float32)

    # ---------------- VMEM budget & cost estimate ----------------
    vmem_working = 2 * (4 * D * TB * 4) + 2 * (2 * TB * 4)   # dbl-buffered in + out
    vmem_limit = max(2 * vmem_working, 8 << 20)
    vmem_limit = min(vmem_limit, (vmem_cap * 3) // 4)
    vmem_limit = int(max(vmem_limit, vmem_working + (1 << 20)))

    cost = pl.CostEstimate(
        flops=int(25 * D * B_pad),
        transcendentals=0,
        bytes_accessed=int((4 * D + 2) * B_pad * 4),
    )

    out = pl.pallas_call(
        functools.partial(transint_kernel, l1_flag),
        out_shape=jax.ShapeDtypeStruct((2, B_pad), jnp.float32),
        grid=grid,
        in_specs=[pl.BlockSpec((4, D, TB), lambda i: (0, 0, i))],
        out_specs=pl.BlockSpec((2, TB), lambda i: (0, i)),
        compiler_params=pltpu.CompilerParams(
            dimension_semantics=("parallel",),
            vmem_limit_bytes=vmem_limit),
        cost_estimate=cost,
    )(stacked)

    return out[0, :B], out[1, :B]


def _ref_forward(ent_emb, vvr_heads, rel2head, rel2mult, bases,
                 pos_h, pos_t, pos_r, neg_h, neg_t, neg_r, l1_flag=True):
    """Pure-JAX reference mirroring the PyTorch bmm formulation."""
    del neg_r
    D = ent_emb.shape[1]
    pos_r_e = vvr_heads[rel2head[pos_r]] * rel2mult[pos_r][:, None]
    pos_sub = ent_emb[pos_h] + pos_r_e - ent_emb[pos_t]
    neg_sub = ent_emb[neg_h] + pos_r_e - ent_emb[neg_t]

    A = bases[pos_r]                                               # [B, 2, D]
    G = jnp.einsum('bkd,bld->bkl', A, A)                           # [B, 2, 2]
    g11, g12, g21, g22 = G[:, 0, 0], G[:, 0, 1], G[:, 1, 0], G[:, 1, 1]
    det = g11 * g22 - g12 * g21
    nz = det != 0.0
    safe_det = jnp.where(nz, det, 1.0)
    inv_main = jnp.stack([jnp.stack([g22, -g12], -1),
                          jnp.stack([-g21, g11], -1)], -2) / safe_det[:, None, None]
    safe_g11 = jnp.where(g11 != 0.0, g11, 1.0)
    inv_fb = jnp.eye(2, dtype=jnp.float32)[None] / safe_g11[:, None, None]
    Ginv = jnp.where(nz[:, None, None], inv_main, inv_fb)

    I = jnp.eye(D, dtype=jnp.float32)
    P = I[None] - jnp.einsum('bkd,bkl,ble->bde', A, Ginv, A)       # [B, D, D]
    pos_p = jnp.einsum('bde,be->bd', P, pos_sub)
    neg_p = jnp.einsum('bde,be->bd', P, neg_sub)
    if l1_flag:
        return jnp.sum(jnp.abs(pos_p), axis=1), jnp.sum(jnp.abs(neg_p), axis=1)
    return jnp.sum(pos_p ** 2, axis=1), jnp.sum(neg_p ** 2, axis=1)


def _xavier_uniform(key, shape):
    fan_in, fan_out = shape[0], shape[1]
    bound = jnp.sqrt(6.0 / (fan_in + fan_out))
    return jax.random.uniform(key, shape, jnp.float32, -bound, bound)


def _l2_normalize_rows(x, eps=1e-12):
    return x / jnp.maximum(jnp.linalg.norm(x, axis=1, keepdims=True), eps)


if __name__ == "__main__":
    # Small config consistent with the module's __init__ (wn18-style, rank-2 bases).
    entity_total = 10
    relation_total = 5
    num_bundle_heads = 3
    embedding_size = 32
    batch_size = 8

    key = jax.random.PRNGKey(0)
    k_ent, k_head, k_base, k_idx = jax.random.split(key, 4)

    # ent_embeddings: xavier_uniform then L2-normalized rows.
    ent_emb = _l2_normalize_rows(_xavier_uniform(k_ent, (entity_total, embedding_size)))
    # vvr_bundle_heads_embs: one row per bundle head.
    vvr_heads = jax.random.normal(k_head, (num_bundle_heads, embedding_size), jnp.float32)

    # r_id2_vrr (host dict in torch): relation -> (bundle head index, multiplier).
    rel2head = jnp.array([0, 1, 2, 1, 0], dtype=jnp.int32)
    rel2mult = jnp.array([1.0, 1.0, 1.0, -1.0, 1.0], dtype=jnp.float32)

    # comb_mats(): per-relation rank<=2 basis rows (row-normalized).  Relation 2
    # exercises the rank-1 path (rank_end == 0 -> zero second row, det == 0 fallback).
    bases = jax.random.normal(k_base, (relation_total, 2, embedding_size), jnp.float32)
    bases = _l2_normalize_rows(bases.reshape(relation_total * 2, embedding_size))
    bases = bases.reshape(relation_total, 2, embedding_size)
    bases = bases.at[2, 1, :].set(0.0)

    ki = jax.random.split(k_idx, 6)
    pos_h = jax.random.randint(ki[0], (batch_size,), 0, entity_total, jnp.int32)
    pos_t = jax.random.randint(ki[1], (batch_size,), 0, entity_total, jnp.int32)
    pos_r = jax.random.randint(ki[2], (batch_size,), 0, relation_total, jnp.int32)
    neg_h = jax.random.randint(ki[3], (batch_size,), 0, entity_total, jnp.int32)
    neg_t = jax.random.randint(ki[4], (batch_size,), 0, entity_total, jnp.int32)
    neg_r = jax.random.randint(ki[5], (batch_size,), 0, relation_total, jnp.int32)

    fwd = jax.jit(transint_forward, static_argnames=("l1_flag",))

    for l1_flag in (True, False):
        pos, neg = fwd(ent_emb, vvr_heads, rel2head, rel2mult, bases,
                       pos_h, pos_t, pos_r, neg_h, neg_t, neg_r, l1_flag=l1_flag)
        pos = jax.block_until_ready(pos)
        neg = jax.block_until_ready(neg)

        pos_ref, neg_ref = _ref_forward(ent_emb, vvr_heads, rel2head, rel2mult, bases,
                                        pos_h, pos_t, pos_r, neg_h, neg_t, neg_r,
                                        l1_flag=l1_flag)
        assert pos.shape == (batch_size,) and neg.shape == (batch_size,)
        assert jnp.allclose(pos, pos_ref, rtol=1e-4, atol=1e-4), (pos, pos_ref)
        assert jnp.allclose(neg, neg_ref, rtol=1e-4, atol=1e-4), (neg, neg_ref)

    print("KERNEL_OK")
</pallas_src>

<mosaic_0001>
module attributes {stable_mosaic.version = 11 : i64} {
  func.func @transint_kernel(%arg0: i32, %arg1: memref<4x32x128xf32, #tpu.memory_space<vmem>>, %arg2: memref<2x128xf32, #tpu.memory_space<vmem>>) attributes {dimension_semantics = [#tpu.dimension_semantics<parallel>], iteration_bounds = array<i64: 1>, scalar_prefetch = 0 : i64, scratch_operands = 0 : i64, tpu.core_type = #tpu.core_type<tc>, window_params = [{transform_indices = @transform_0, window_bounds = array<i64: 4, 32, 128>}, {transform_indices = @transform_1, window_bounds = array<i64: 2, 128>}]} {
    %c2 = arith.constant 2 : index
    %c0 = arith.constant 0 : index
    %c0_0 = arith.constant 0 : index
    %0 = vector.load %arg1[%c2, %c0, %c0_0] : memref<4x32x128xf32, #tpu.memory_space<vmem>>, vector<1x32x128xf32>
    %1 = vector.shape_cast %0 : vector<1x32x128xf32> to vector<32x128xf32>
    %c3 = arith.constant 3 : index
    %c0_1 = arith.constant 0 : index
    %c0_2 = arith.constant 0 : index
    %2 = vector.load %arg1[%c3, %c0_1, %c0_2] : memref<4x32x128xf32, #tpu.memory_space<vmem>>, vector<1x32x128xf32>
    %3 = vector.shape_cast %2 : vector<1x32x128xf32> to vector<32x128xf32>
    %4 = arith.mulf %1, %1 : vector<32x128xf32>
    %cst = arith.constant dense<0.000000e+00> : vector<128xf32>
    %5 = vector.multi_reduction <add>, %4, %cst [0] : vector<32x128xf32> to vector<128xf32>
    %6 = vector.shape_cast %5 : vector<128xf32> to vector<1x128xf32>
    %7 = arith.mulf %1, %3 : vector<32x128xf32>
    %cst_3 = arith.constant dense<0.000000e+00> : vector<128xf32>
    %8 = vector.multi_reduction <add>, %7, %cst_3 [0] : vector<32x128xf32> to vector<128xf32>
    %9 = vector.shape_cast %8 : vector<128xf32> to vector<1x128xf32>
    %10 = arith.mulf %3, %3 : vector<32x128xf32>
    %cst_4 = arith.constant dense<0.000000e+00> : vector<128xf32>
    %11 = vector.multi_reduction <add>, %10, %cst_4 [0] : vector<32x128xf32> to vector<128xf32>
    %12 = vector.shape_cast %11 : vector<128xf32> to vector<1x128xf32>
    %13 = arith.mulf %6, %12 : vector<1x128xf32>
    %14 = arith.mulf %9, %9 : vector<1x128xf32>
    %15 = arith.subf %13, %14 : vector<1x128xf32>
    %cst_5 = arith.constant 0.000000e+00 : f32
    %16 = vector.broadcast %cst_5 : f32 to vector<1x128xf32>
    %17 = arith.cmpf one, %15, %16 : vector<1x128xf32>
    %cst_6 = arith.constant 1.000000e+00 : f32
    %18 = vector.broadcast %cst_6 : f32 to vector<1x128xf32>
    %19 = arith.select %17, %15, %18 : vector<1x128xi1>, vector<1x128xf32>
    %20 = tpu.reciprocal %19 : vector<1x128xf32> -> vector<1x128xf32>
    %cst_7 = arith.constant 0.000000e+00 : f32
    %21 = vector.broadcast %cst_7 : f32 to vector<1x128xf32>
    %22 = arith.cmpf one, %6, %21 : vector<1x128xf32>
    %cst_8 = arith.constant 1.000000e+00 : f32
    %23 = vector.broadcast %cst_8 : f32 to vector<1x128xf32>
    %24 = arith.select %22, %6, %23 : vector<1x128xi1>, vector<1x128xf32>
    %25 = tpu.reciprocal %24 : vector<1x128xf32> -> vector<1x128xf32>
    %26 = arith.mulf %12, %20 : vector<1x128xf32>
    %27 = arith.select %17, %26, %25 : vector<1x128xi1>, vector<1x128xf32>
    %28 = arith.mulf %6, %20 : vector<1x128xf32>
    %29 = arith.select %17, %28, %25 : vector<1x128xi1>, vector<1x128xf32>
    %cst_9 = arith.constant 0.000000e+00 : f32
    %30 = vector.broadcast %cst_9 : f32 to vector<1x128xf32>
    %31 = arith.subf %30, %9 : vector<1x128xf32>
    %32 = arith.mulf %31, %20 : vector<1x128xf32>
    %cst_10 = arith.constant 0.000000e+00 : f32
    %33 = vector.broadcast %cst_10 : f32 to vector<1x128xf32>
    %34 = arith.select %17, %32, %33 : vector<1x128xi1>, vector<1x128xf32>
    %c0_11 = arith.constant 0 : index
    %c0_12 = arith.constant 0 : index
    %c0_13 = arith.constant 0 : index
    %35 = vector.load %arg1[%c0_11, %c0_12, %c0_13] : memref<4x32x128xf32, #tpu.memory_space<vmem>>, vector<1x32x128xf32>
    %36 = vector.shape_cast %35 : vector<1x32x128xf32> to vector<32x128xf32>
    %37 = arith.mulf %1, %36 : vector<32x128xf32>
    %cst_14 = arith.constant dense<0.000000e+00> : vector<128xf32>
    %38 = vector.multi_reduction <add>, %37, %cst_14 [0] : vector<32x128xf32> to vector<128xf32>
    %39 = vector.shape_cast %38 : vector<128xf32> to vector<1x128xf32>
    %40 = arith.mulf %3, %36 : vector<32x128xf32>
    %cst_15 = arith.constant dense<0.000000e+00> : vector<128xf32>
    %41 = vector.multi_reduction <add>, %40, %cst_15 [0] : vector<32x128xf32> to vector<128xf32>
    %42 = vector.shape_cast %41 : vector<128xf32> to vector<1x128xf32>
    %43 = arith.mulf %27, %39 : vector<1x128xf32>
    %44 = arith.mulf %34, %42 : vector<1x128xf32>
    %45 = arith.addf %43, %44 : vector<1x128xf32>
    %46 = arith.mulf %34, %39 : vector<1x128xf32>
    %47 = arith.mulf %29, %42 : vector<1x128xf32>
    %48 = arith.addf %46, %47 : vector<1x128xf32>
    %49 = vector.broadcast %45 : vector<1x128xf32> to vector<32x128xf32>
    %50 = arith.mulf %49, %1 : vector<32x128xf32>
    %51 = arith.subf %36, %50 : vector<32x128xf32>
    %52 = vector.broadcast %48 : vector<1x128xf32> to vector<32x128xf32>
    %53 = arith.mulf %52, %3 : vector<32x128xf32>
    %54 = arith.subf %51, %53 : vector<32x128xf32>
    %55 = math.absf %54 : vector<32x128xf32>
    %cst_16 = arith.constant dense<0.000000e+00> : vector<128xf32>
    %56 = vector.multi_reduction <add>, %55, %cst_16 [0] : vector<32x128xf32> to vector<128xf32>
    %57 = vector.shape_cast %56 : vector<128xf32> to vector<1x128xf32>
    %c0_17 = arith.constant 0 : index
    %c0_18 = arith.constant 0 : index
    %58 = vector.load %arg2[%c0_17, %c0_18] : memref<2x128xf32, #tpu.memory_space<vmem>>, vector<1x128xf32>
    tpu.vector_store %arg2[%c0_17, %c0_18], %57 {strides = array<i32>} : memref<2x128xf32, #tpu.memory_space<vmem>>, vector<1x128xf32>,
    %c1 = arith.constant 1 : index
    %c0_19 = arith.constant 0 : index
    %c0_20 = arith.constant 0 : index
    %59 = vector.load %arg1[%c1, %c0_19, %c0_20] : memref<4x32x128xf32, #tpu.memory_space<vmem>>, vector<1x32x128xf32>
    %60 = vector.shape_cast %59 : vector<1x32x128xf32> to vector<32x128xf32>
    %61 = arith.mulf %1, %60 : vector<32x128xf32>
    %cst_21 = arith.constant dense<0.000000e+00> : vector<128xf32>
    %62 = vector.multi_reduction <add>, %61, %cst_21 [0] : vector<32x128xf32> to vector<128xf32>
    %63 = vector.shape_cast %62 : vector<128xf32> to vector<1x128xf32>
    %64 = arith.mulf %3, %60 : vector<32x128xf32>
    %cst_22 = arith.constant dense<0.000000e+00> : vector<128xf32>
    %65 = vector.multi_reduction <add>, %64, %cst_22 [0] : vector<32x128xf32> to vector<128xf32>
    %66 = vector.shape_cast %65 : vector<128xf32> to vector<1x128xf32>
    %67 = arith.mulf %27, %63 : vector<1x128xf32>
    %68 = arith.mulf %34, %66 : vector<1x128xf32>
    %69 = arith.addf %67, %68 : vector<1x128xf32>
    %70 = arith.mulf %34, %63 : vector<1x128xf32>
    %71 = arith.mulf %29, %66 : vector<1x128xf32>
    %72 = arith.addf %70, %71 : vector<1x128xf32>
    %73 = vector.broadcast %69 : vector<1x128xf32> to vector<32x128xf32>
    %74 = arith.mulf %73, %1 : vector<32x128xf32>
    %75 = arith.subf %60, %74 : vector<32x128xf32>
    %76 = vector.broadcast %72 : vector<1x128xf32> to vector<32x128xf32>
    %77 = arith.mulf %76, %3 : vector<32x128xf32>
    %78 = arith.subf %75, %77 : vector<32x128xf32>
    %79 = math.absf %78 : vector<32x128xf32>
    %cst_23 = arith.constant dense<0.000000e+00> : vector<128xf32>
    %80 = vector.multi_reduction <add>, %79, %cst_23 [0] : vector<32x128xf32> to vector<128xf32>
    %81 = vector.shape_cast %80 : vector<128xf32> to vector<1x128xf32>
    %c1_24 = arith.constant 1 : index
    %c0_25 = arith.constant 0 : index
    %82 = vector.load %arg2[%c1_24, %c0_25] : memref<2x128xf32, #tpu.memory_space<vmem>>, vector<1x128xf32>
    tpu.vector_store %arg2[%c1_24, %c0_25], %81 {strides = array<i32>} : memref<2x128xf32, #tpu.memory_space<vmem>>, vector<1x128xf32>,
    return
  }
  func.func @transform_0(%arg0: i32) -> (i32, i32, i32) {
    %c0_i32 = arith.constant 0 : i32
    %c0_i32_0 = arith.constant 0 : i32
    %c0_i32_1 = arith.constant 0 : i32
    return %c0_i32, %c0_i32_0, %arg0 : i32, i32, i32
  }
  func.func @transform_1(%arg0: i32) -> (i32, i32) {
    %c0_i32 = arith.constant 0 : i32
    %c0_i32_0 = arith.constant 0 : i32
    return %c0_i32, %arg0 : i32, i32
  }
}

</mosaic_0001>

<llo_original>
// kernel: transint_forward.1
$region0: #{transint_forward.1}
  #allocation0 [shape = 'u32[]', space=smem, size = 0x4, offset = 0x4, fixed_abs, tag = 'smem constant byte address 0x4 - core index']
  #allocation1 [shape = 'u32[72,128]{1,0:T(1,128)}', space=vmem, size = 0x9000, scoped, tag = 'internal scratch']
  %s0 = inlined_call_operand.vmem [shape: f32[4,32,128], index: 0, kind: input, shape index: {}]
  %s1 = inlined_call_operand.vmem [shape: f32[2,128], index: 1, kind: output, shape index: {}]
  %s2 = sld [smem:[#allocation0]]
  $region14: #{transint_forward.1} parent=0
    _
  %s4 = ssub.s32 1, %s2
  %s5 = scalar_select 0, %s4, %s2
  // Predicated region
  $region2: #{transint_forward.1} parent=0 // pred_check
    _
  $region3: #{transint_forward.1} parent=0 // pred_check_branch
    %7 = sbr.rel (0) target = $region5
  $region4: #{transint_forward.1} parent=0 // pred_region
    _
  $region5: #{transint_forward.1} parent=0 // pred_fallthru
    _
  %s8 = scalar_lea.vmem %s0, 64
  %v9 = vld [vmem:[%s8] sm:$0xff]
  %v10 = vld [vmem:[%s8 + $0x8] sm:$0xff]
  %v11 = vld [vmem:[%s8 + $0x10] sm:$0xff]
  %v12 = vld [vmem:[%s8 + $0x18] sm:$0xff]
  %s13 = scalar_lea.vmem %s0, 96
  %v14 = vld [vmem:[%s13] sm:$0xff]
  %v15 = vld [vmem:[%s13 + $0x8] sm:$0xff]
  %v16 = vld [vmem:[%s13 + $0x10] sm:$0xff]
  %v17 = vld [vmem:[%s13 + $0x18] sm:$0xff]
  %v18 = vmul.f32 %v9, %v9
  %v19 = vmul.f32 %v10, %v10
  %v20 = vmul.f32 %v11, %v11
  %v21 = vmul.f32 %v12, %v12
  %v22 = vadd.f32 %v18, %v19
  %v23 = vadd.f32 %v22, %v20
  %v24 = vadd.f32 %v23, %v21
  %v25 = vrot.slane %v24, 4
  %v26 = vadd.f32 %v24, %v25
  %v27 = vrot.slane %v26, 2
  %v28 = vadd.f32 %v26, %v27
  %v29 = vrot.slane %v28, 1
  %v30 = vadd.f32 %v28, %v29
  %v31 = vmul.f32 %v9, %v14
  %v32 = vmul.f32 %v10, %v15
  %v33 = vmul.f32 %v11, %v16
  %v34 = vmul.f32 %v12, %v17
  %v35 = vadd.f32 %v31, %v32
  %v36 = vadd.f32 %v35, %v33
  %v37 = vadd.f32 %v36, %v34
  %v38 = vrot.slane %v37, 4
  %v39 = vadd.f32 %v37, %v38
  %v40 = vrot.slane %v39, 2
  %v41 = vadd.f32 %v39, %v40
  %v42 = vrot.slane %v41, 1
  %v43 = vadd.f32 %v41, %v42
  %v44 = vmul.f32 %v14, %v14
  %v45 = vmul.f32 %v15, %v15
  %v46 = vmul.f32 %v16, %v16
  %v47 = vmul.f32 %v17, %v17
  %v48 = vadd.f32 %v44, %v45
  %v49 = vadd.f32 %v48, %v46
  %v50 = vadd.f32 %v49, %v47
  %v51 = vrot.slane %v50, 4
  %v52 = vadd.f32 %v50, %v51
  %v53 = vrot.slane %v52, 2
  %v54 = vadd.f32 %v52, %v53
  %v55 = vrot.slane %v54, 1
  %v56 = vadd.f32 %v54, %v55
  %v57 = vmul.f32 %v30, %v56
  %v58 = vmul.f32 %v43, %v43
  %v59 = vsub.f32 %v57, %v58
  %vm60 = vcmp.ne.f32.partialorder %v59, 0.0
  %v61 = vsel %vm60, %v59, 1.0
  %v62 = vrcp.pop %v61
  %v63 = vmul.f32 %v61, %v62
  %v64 = vsub.f32 1.0, %v63
  %v65 = vmul.f32 %v62, %v64
  %v66 = vadd.f32 %v62, %v65
  %vm67 = vweird.f32 %v61
  %vm68 = vweird.f32 %v62
  %vm69 = vmor %vm67, %vm68
  %v70 = vsel %vm69, %v62, %v66
  %v71 = vand.u32 2147483647, %v61
  %vm72 = vcmp.eq.f32.partialorder %v71, 8.507059e+37
  %v73 = vand.u32 %v61, 2147483648
  %v74 = vor.u32 1.1754944e-38, %v73
  %v75 = vsel %vm72, %v74, %v70
  %vm76 = vcmp.ne.f32.partialorder %v30, 0.0
  %v77 = vsel %vm76, %v30, 1.0
  %v78 = vrcp.pop %v77
  %v79 = vmul.f32 %v77, %v78
  %v80 = vsub.f32 1.0, %v79
  %v81 = vmul.f32 %v78, %v80
  %v82 = vadd.f32 %v78, %v81
  %vm83 = vweird.f32 %v77
  %vm84 = vweird.f32 %v78
  %vm85 = vmor %vm83, %vm84
  %v86 = vsel %vm85, %v78, %v82
  %v87 = vand.u32 2147483647, %v77
  %vm88 = vcmp.eq.f32.partialorder %v87, 8.507059e+37
  %v89 = vand.u32 %v77, 2147483648
  %v90 = vor.u32 1.1754944e-38, %v89
  %v91 = vsel %vm88, %v90, %v86
  %v92 = vmul.f32 %v56, %v75
  %v93 = vsel %vm60, %v92, %v91
  %v94 = vmul.f32 %v30, %v75
  %v95 = vsel %vm60, %v94, %v91
  %v96 = vsub.f32 0.0, %v43
  %v97 = vmul.f32 %v96, %v75
  %v98 = vsel %vm60, %v97, 0.0
  %v99 = vld [vmem:[%s0] sm:$0xff]
  %v100 = vld [vmem:[%s0 + $0x8] sm:$0xff]
  %v101 = vld [vmem:[%s0 + $0x10] sm:$0xff]
  %v102 = vld [vmem:[%s0 + $0x18] sm:$0xff]
  %v103 = vmul.f32 %v9, %v99
  %v104 = vmul.f32 %v10, %v100
  %v105 = vmul.f32 %v11, %v101
  %v106 = vmul.f32 %v12, %v102
  %v107 = vadd.f32 %v103, %v104
  %v108 = vadd.f32 %v107, %v105
  %v109 = vadd.f32 %v108, %v106
  %v110 = vrot.slane %v109, 4
  %v111 = vadd.f32 %v109, %v110
  %v112 = vrot.slane %v111, 2
  %v113 = vadd.f32 %v111, %v112
  %v114 = vrot.slane %v113, 1
  %v115 = vadd.f32 %v113, %v114
  %v116 = vmul.f32 %v14, %v99
  %v117 = vmul.f32 %v15, %v100
  %v118 = vmul.f32 %v16, %v101
  %v119 = vmul.f32 %v17, %v102
  %v120 = vadd.f32 %v116, %v117
  %v121 = vadd.f32 %v120, %v118
  %v122 = vadd.f32 %v121, %v119
  %v123 = vrot.slane %v122, 4
  %v124 = vadd.f32 %v122, %v123
  %v125 = vrot.slane %v124, 2
  %v126 = vadd.f32 %v124, %v125
  %v127 = vrot.slane %v126, 1
  %v128 = vadd.f32 %v126, %v127
  %v129 = vmul.f32 %v93, %v115
  %v130 = vmul.f32 %v98, %v128
  %v131 = vadd.f32 %v129, %v130
  %v132 = vmul.f32 %v98, %v115
  %v133 = vmul.f32 %v95, %v128
  %v134 = vadd.f32 %v132, %v133
  %v135 = vmul.f32 %v131, %v9
  %v136 = vmul.f32 %v131, %v10
  %v137 = vmul.f32 %v131, %v11
  %v138 = vmul.f32 %v131, %v12
  %v139 = vsub.f32 %v99, %v135
  %v140 = vsub.f32 %v100, %v136
  %v141 = vsub.f32 %v101, %v137
  %v142 = vsub.f32 %v102, %v138
  %v143 = vmul.f32 %v134, %v14
  %v144 = vmul.f32 %v134, %v15
  %v145 = vmul.f32 %v134, %v16
  %v146 = vmul.f32 %v134, %v17
  %v147 = vsub.f32 %v139, %v143
  %v148 = vsub.f32 %v140, %v144
  %v149 = vsub.f32 %v141, %v145
  %v150 = vsub.f32 %v142, %v146
  %v151 = vand.u32 2147483647, %v147
  %v152 = vand.u32 2147483647, %v148
  %v153 = vand.u32 2147483647, %v149
  %v154 = vand.u32 2147483647, %v150
  %v155 = vadd.f32 %v151, %v152
  %v156 = vadd.f32 %v155, %v153
  %v157 = vadd.f32 %v156, %v154
  %v158 = vrot.slane %v157, 4
  %v159 = vadd.f32 %v157, %v158
  %v160 = vrot.slane %v159, 2
  %v161 = vadd.f32 %v159, %v160
  %v162 = vrot.slane %v161, 1
  %v163 = vadd.f32 %v161, %v162
  %164 = vst [vmem:[%s1] sm:$0x1] %v163
  %s165 = scalar_lea.vmem %s0, 32
  %v166 = vld [vmem:[%s165] sm:$0xff]
  %v167 = vld [vmem:[%s165 + $0x8] sm:$0xff]
  %v168 = vld [vmem:[%s165 + $0x10] sm:$0xff]
  %v169 = vld [vmem:[%s165 + $0x18] sm:$0xff]
  %v170 = vmul.f32 %v9, %v166
  %v171 = vmul.f32 %v10, %v167
  %v172 = vmul.f32 %v11, %v168
  %v173 = vmul.f32 %v12, %v169
  %v174 = vadd.f32 %v170, %v171
  %v175 = vadd.f32 %v174, %v172
  %v176 = vadd.f32 %v175, %v173
  %v177 = vrot.slane %v176, 4
  %v178 = vadd.f32 %v176, %v177
  %v179 = vrot.slane %v178, 2
  %v180 = vadd.f32 %v178, %v179
  %v181 = vrot.slane %v180, 1
  %v182 = vadd.f32 %v180, %v181
  %v183 = vmul.f32 %v14, %v166
  %v184 = vmul.f32 %v15, %v167
  %v185 = vmul.f32 %v16, %v168
  %v186 = vmul.f32 %v17, %v169
  %v187 = vadd.f32 %v183, %v184
  %v188 = vadd.f32 %v187, %v185
  %v189 = vadd.f32 %v188, %v186
  %v190 = vrot.slane %v189, 4
  %v191 = vadd.f32 %v189, %v190
  %v192 = vrot.slane %v191, 2
  %v193 = vadd.f32 %v191, %v192
  %v194 = vrot.slane %v193, 1
  %v195 = vadd.f32 %v193, %v194
  %v196 = vmul.f32 %v93, %v182
  %v197 = vmul.f32 %v98, %v195
  %v198 = vadd.f32 %v196, %v197
  %v199 = vmul.f32 %v98, %v182
  %v200 = vmul.f32 %v95, %v195
  %v201 = vadd.f32 %v199, %v200
  %v202 = vmul.f32 %v198, %v9
  %v203 = vmul.f32 %v198, %v10
  %v204 = vmul.f32 %v198, %v11
  %v205 = vmul.f32 %v198, %v12
  %v206 = vsub.f32 %v166, %v202
  %v207 = vsub.f32 %v167, %v203
  %v208 = vsub.f32 %v168, %v204
  %v209 = vsub.f32 %v169, %v205
  %v210 = vmul.f32 %v201, %v14
  %v211 = vmul.f32 %v201, %v15
  %v212 = vmul.f32 %v201, %v16
  %v213 = vmul.f32 %v201, %v17
  %v214 = vsub.f32 %v206, %v210
  %v215 = vsub.f32 %v207, %v211
  %v216 = vsub.f32 %v208, %v212
  %v217 = vsub.f32 %v209, %v213
  %v218 = vand.u32 2147483647, %v214
  %v219 = vand.u32 2147483647, %v215
  %v220 = vand.u32 2147483647, %v216
  %v221 = vand.u32 2147483647, %v217
  %v222 = vadd.f32 %v218, %v219
  %v223 = vadd.f32 %v222, %v220
  %v224 = vadd.f32 %v223, %v221
  %v225 = vrot.slane %v224, 4
  %v226 = vadd.f32 %v224, %v225
  %v227 = vrot.slane %v226, 2
  %v228 = vadd.f32 %v226, %v227
  %v229 = vrot.slane %v228, 1
  %v230 = vadd.f32 %v228, %v229
  %231 = vst [vmem:[%s1 + $0x1] sm:$0x1] %v230
  // Predicated region
  $region6: #{transint_forward.1} parent=0 // pred_check
    _
  $region7: #{transint_forward.1} parent=0 // pred_check_branch
    %233 = sbr.rel (0) target = $region9
  $region8: #{transint_forward.1} parent=0 // pred_region
    _
  $region9: #{transint_forward.1} parent=0 // pred_fallthru
    _
  // Predicated region
  $region10: #{transint_forward.1} parent=0 // pred_check
    _
  $region11: #{transint_forward.1} parent=0 // pred_check_branch
    %235 = sbr.rel (0) target = $region13
  $region12: #{transint_forward.1} parent=0 // pred_region
    _
  $region13: #{transint_forward.1} parent=0 // pred_fallthru
    _

</llo_original>
